<compile_context>
chip_gen: v6e
topology: v6e:2x2x1
jax: 0.10.0
libtpu: 0.0.40
codegen_flags: <defaults>
</compile_context>

<pallas_src>
import functools

import jax
import jax.numpy as jnp
from jax import lax
from jax.experimental import pallas as pl
from jax.experimental.pallas import tpu as pltpu

_NEG_BIG = -1e30  # finite "-inf" so exp()/max() never produce NaNs


def _round_up(x, m):
    return (x + m - 1) // m * m


def _vmem_capacity_bytes():
    """Per-core VMEM capacity; conservative (v7x, 64 MiB) fallback."""
    try:
        return int(pltpu.get_tpu_info().vmem_capacity_bytes)
    except Exception:
        return 64 * 1024 * 1024


def _pick_tiles(B, D_pad, vmem_budget):
    """Choose (B_pad, TQ, TK). B_pad is divisible by both TQ and TK."""
    def fits(tq, tk):
        inputs = 2 * tq * D_pad * 2 + 2 * D_pad * tk * 2   # double-buffered bf16 tiles
        temps = 8 * tq * tk * 4                            # (TQ,TK) f32 temporaries
        return inputs + temps <= vmem_budget

    if B <= 32:
        b_pad = max(_round_up(B, 16), 16)                  # 16-row bf16 packing
        return b_pad, b_pad, b_pad
    if B <= 256:
        # >= 2 row blocks so both v7x TensorCores get work on medium batches.
        b_pad = _round_up(B, 32)
        return b_pad, b_pad // 2, b_pad

    # Large-B: big tiles amortize per-grid-step overhead and fk re-streaming,
    # shrunk if they would not fit the (generation-dependent) VMEM budget.
    tq = 512 if B >= 1024 else 256
    while tq > 128 and not fits(tq, tq):
        tq //= 2
    b_pad = _round_up(B, tq)
    tk = tq
    if b_pad % (2 * tq) == 0 and fits(tq, 2 * tq):
        tk = 2 * tq
    return b_pad, tq, tk


def _supcon_tiled_kernel(fq_ref, fkt_ref, labq_ref, labc_ref,
                         loss_ref, single_ref,
                         m_sc, d_sc, s_sc, c_sc,
                         *, inv_temp, b_orig, b_pad, tq, tk):
    # fq_ref : (TQ, Dp)       row tile of features
    # fkt_ref: (Dp, TK)       column tile of pre-transposed features
    # labq_ref: (TQ, 1) int32 row labels ; labc_ref: (1, TK) int32 column labels
    # loss_ref, single_ref: (TQ, 1) f32 per-row outputs
    # m_sc, d_sc, s_sc, c_sc: (TQ, 1) f32 running max / denom / pos-sum / pos-count
    i = pl.program_id(0)
    k = pl.program_id(1)

    @pl.when(k == 0)
    def _init():
        m_sc[...] = jnp.full_like(m_sc, _NEG_BIG)
        d_sc[...] = jnp.zeros_like(d_sc)
        s_sc[...] = jnp.zeros_like(s_sc)
        c_sc[...] = jnp.zeros_like(c_sc)

    # Canonical (M,K)x(K,N) MXU matmul, f32 accumulation, one 1/T multiply.
    sim = jnp.dot(fq_ref[...], fkt_ref[...],
                  preferred_element_type=jnp.float32) * inv_temp       # (TQ, TK) f32

    pos_raw = labq_ref[...] == labc_ref[...]                           # (TQ, TK) bool

    def _accumulate(keep):
        m_prev = m_sc[...]
        sim_k = sim if keep is None else jnp.where(keep, sim, _NEG_BIG)
        m_new = jnp.maximum(m_prev, jnp.max(sim_k, axis=1, keepdims=True))
        # Masked entries: exp(NEG_BIG - m_new) underflows to 0 — every column
        # tile has >= 1 kept column per row (B >= 2, column padding < TK).
        p = jnp.exp(sim_k - m_new)
        d_sc[...] = jnp.exp(m_prev - m_new) * d_sc[...] + jnp.sum(p, axis=1, keepdims=True)
        m_sc[...] = m_new
        pos = pos_raw if keep is None else (pos_raw & keep)
        pos_f = pos.astype(jnp.float32)
        s_sc[...] = s_sc[...] + jnp.sum(pos_f * sim, axis=1, keepdims=True)
        c_sc[...] = c_sc[...] + jnp.sum(pos_f, axis=1, keepdims=True)

    r0 = i * tq
    c0 = k * tk
    touches_diag = jnp.logical_and(r0 < c0 + tk, c0 < r0 + tq)
    has_pad_cols = (c0 + tk) > b_orig
    needs_mask = jnp.logical_or(touches_diag, has_pad_cols)

    @pl.when(needs_mask)
    def _masked_path():
        # Small iotas + broadcast compares (no full (TQ,TK) int32 iotas).
        row_ids = r0 + lax.broadcasted_iota(jnp.int32, (tq, 1), 0)
        col_ids = c0 + lax.broadcasted_iota(jnp.int32, (1, tk), 1)
        keep = (row_ids != col_ids) & (col_ids < b_orig)
        _accumulate(keep)

    @pl.when(jnp.logical_not(needs_mask))
    def _fast_path():
        _accumulate(None)

    @pl.when(k == pl.num_programs(1) - 1)
    def _finalize():
        c = c_sc[...]
        single_f = jnp.where(c == 0.0, 1.0, 0.0)
        lse = m_sc[...] + jnp.log(d_sc[...])          # log sum_{j != i} exp(sim_ij)
        # sum_j mask*log_prob = s - c*lse ; exact divide (once per row block).
        mean_pos = (s_sc[...] - c * lse) / (c + single_f)
        loss = -mean_pos * (1.0 - single_f)
        if b_pad > b_orig:                             # static: only if rows are padded
            row_idx = r0 + lax.broadcasted_iota(jnp.int32, (tq, 1), 0)
            valid = row_idx < b_orig
            loss = jnp.where(valid, loss, 0.0)
            single_f = jnp.where(valid, single_f, 0.0)
        loss_ref[...] = loss
        single_ref[...] = single_f


def supcon_loss_clear(features, labels, temperature=0.07, precise_matmul=False):
    """Pallas TPU implementation of SupConLoss_clear.forward.

    The `opt`/device argument of the PyTorch module is placement-only and has
    no JAX equivalent.  precise_matmul=True keeps f32 MXU operands (exact parity
    with the f32 PyTorch matmul); default bf16 operands / f32 accumulation.
    """
    features = jnp.asarray(features, jnp.float32)        # (B, D)
    labels = jnp.asarray(labels, jnp.int32).reshape(-1)  # (B,)
    B, D = features.shape
    if B < 2:
        raise ValueError("SupConLoss_clear requires batch_size >= 2 "
                         "(B=1 is undefined in the reference module).")

    # ---- generation-aware VMEM budget & TPU-friendly padding/tiling ---------
    D_pad = max(_round_up(D, 128), 128)
    vmem_cap = _vmem_capacity_bytes()
    vmem_limit = max(min(int(vmem_cap * 0.70), 100 * 1024 * 1024), 32 * 1024 * 1024)
    B_pad, TQ, TK = _pick_tiles(B, D_pad, int(vmem_limit * 0.85))

    mxu_dtype = jnp.float32 if precise_matmul else jnp.bfloat16
    f = jnp.zeros((B_pad, D_pad), jnp.float32).at[:B, :D].set(features)
    f = f.astype(mxu_dtype)
    fT = f.T                                  # transpose ONCE in XLA (no per-tile XLU)
    lab = jnp.full((B_pad,), -1, jnp.int32).at[:B].set(labels)
    lab_row = lab.reshape(B_pad, 1)
    lab_col = lab.reshape(1, B_pad)

    grid = (B_pad // TQ, B_pad // TK)
    kernel = functools.partial(
        _supcon_tiled_kernel,
        inv_temp=float(1.0 / temperature), b_orig=B, b_pad=B_pad, tq=TQ, tk=TK)

    loss_vec, single_vec = pl.pallas_call(
        kernel,
        out_shape=(jax.ShapeDtypeStruct((B_pad, 1), jnp.float32),
                   jax.ShapeDtypeStruct((B_pad, 1), jnp.float32)),
        grid_spec=pltpu.PrefetchScalarGridSpec(
            num_scalar_prefetch=0,
            grid=grid,
            in_specs=[
                pl.BlockSpec((TQ, D_pad), lambda i, k: (i, 0)),   # row feature tile
                pl.BlockSpec((D_pad, TK), lambda i, k: (0, k)),   # col tile of f^T
                pl.BlockSpec((TQ, 1), lambda i, k: (i, 0)),       # row labels
                pl.BlockSpec((1, TK), lambda i, k: (0, k)),       # col labels
            ],
            out_specs=[
                pl.BlockSpec((TQ, 1), lambda i, k: (i, 0)),
                pl.BlockSpec((TQ, 1), lambda i, k: (i, 0)),
            ],
            scratch_shapes=[pltpu.VMEM((TQ, 1), jnp.float32)] * 4,
        ),
        compiler_params=pltpu.CompilerParams(
            dimension_semantics=("parallel", "arbitrary"),
            vmem_limit_bytes=vmem_limit),
    )(f, fT, lab_row, lab_col)

    # Tiny final scalar reduction (B values) in plain JAX.
    single_sum = jnp.sum(single_vec)
    return jnp.sum(loss_vec) / (jnp.float32(B) - single_sum)


def _reference_loss(features, labels, temperature=0.07, matmul_dtype=jnp.float32):
    """Pure-JAX reference mirroring the PyTorch forward (optionally with the
    same bf16 matmul-operand rounding the kernel uses)."""
    f = jnp.asarray(features, jnp.float32)
    lab = jnp.asarray(labels, jnp.int32).reshape(-1, 1)
    B = f.shape[0]
    fm = f.astype(matmul_dtype)
    adc = jnp.dot(fm, fm.T, preferred_element_type=jnp.float32).astype(jnp.float32)
    adc = adc / temperature
    mask = (lab == lab.T).astype(jnp.float32)
    logits = adc - jnp.max(adc, axis=1, keepdims=True)
    logits_mask = 1.0 - jnp.eye(B, dtype=jnp.float32)
    mask = mask * logits_mask
    single = (mask.sum(1) == 0).astype(jnp.float32)
    exp_logits = jnp.exp(logits) * logits_mask
    log_prob = logits - jnp.log(exp_logits.sum(1, keepdims=True))
    mean_log_prob_pos = (mask * log_prob).sum(1) / (mask.sum(1) + single)
    loss = -mean_log_prob_pos * (1.0 - single)
    return loss.sum() / (B - single.sum())


if __name__ == "__main__":
    k0, k1, k2, k3, k4, k5 = jax.random.split(jax.random.PRNGKey(0), 6)

    # --- small case (typical tiny batch; single (1,1) grid, masked path) -----
    B, D = 8, 32
    feats = jax.random.normal(k0, (B, D), dtype=jnp.float32)
    feats = feats / jnp.linalg.norm(feats, axis=1, keepdims=True)
    labs = jax.random.randint(k1, (B,), 0, 4, dtype=jnp.int32)
    loss = jax.block_until_ready(supcon_loss_clear(feats, labs, 0.07))
    ref = jax.block_until_ready(
        _reference_loss(feats, labs, 0.07, matmul_dtype=jnp.bfloat16))
    assert jnp.allclose(loss, ref, rtol=5e-3, atol=5e-3), (loss, ref)

    # --- medium batch: 2 row blocks (megacore split), padded rows/cols -------
    B1, D1 = 100, 40
    feats1 = jax.random.normal(k2, (B1, D1), dtype=jnp.float32)
    feats1 = feats1 / jnp.linalg.norm(feats1, axis=1, keepdims=True)
    labs1 = jax.random.randint(k3, (B1,), 0, 7, dtype=jnp.int32)
    loss1 = jax.block_until_ready(supcon_loss_clear(feats1, labs1, 0.07))
    ref1 = jax.block_until_ready(
        _reference_loss(feats1, labs1, 0.07, matmul_dtype=jnp.bfloat16))
    assert jnp.allclose(loss1, ref1, rtol=5e-3, atol=5e-3), (loss1, ref1)

    # --- multi-tile path (grid (3,3)): online LSE across column tiles, fast
    #     (mask-free) off-diagonal tiles, padded rows/cols, non-128-multiple D
    B2, D2 = 600, 72
    feats2 = jax.random.normal(k4, (B2, D2), dtype=jnp.float32)
    feats2 = feats2 / jnp.linalg.norm(feats2, axis=1, keepdims=True)
    labs2 = jax.random.randint(k5, (B2,), 0, 10, dtype=jnp.int32)
    loss2 = jax.block_until_ready(supcon_loss_clear(feats2, labs2, 0.07))
    ref2 = jax.block_until_ready(
        _reference_loss(feats2, labs2, 0.07, matmul_dtype=jnp.bfloat16))
    assert jnp.allclose(loss2, ref2, rtol=5e-3, atol=5e-3), (loss2, ref2)

    print("KERNEL_OK")
</pallas_src>

<mosaic_0001>
module attributes {stable_mosaic.version = 11 : i64} {
  func.func @_supcon_tiled_kernel(%arg0: i32, %arg1: i32, %arg2: memref<16x128xbf16, #tpu.memory_space<vmem>>, %arg3: memref<128x16xbf16, #tpu.memory_space<vmem>>, %arg4: memref<16x1xi32, #tpu.memory_space<vmem>>, %arg5: memref<1x16xi32, #tpu.memory_space<vmem>>, %arg6: memref<16x1xf32, #tpu.memory_space<vmem>>, %arg7: memref<16x1xf32, #tpu.memory_space<vmem>>, %arg8: memref<16x1xf32, #tpu.memory_space<vmem>>, %arg9: memref<16x1xf32, #tpu.memory_space<vmem>>, %arg10: memref<16x1xf32, #tpu.memory_space<vmem>>, %arg11: memref<16x1xf32, #tpu.memory_space<vmem>>) attributes {dimension_semantics = [#tpu.dimension_semantics<parallel>, #tpu.dimension_semantics<arbitrary>], iteration_bounds = array<i64: 1, 1>, scalar_prefetch = 0 : i64, scratch_operands = 4 : i64, tpu.core_type = #tpu.core_type<tc>, window_params = [{transform_indices = @transform_0, window_bounds = array<i64: 16, 128>}, {transform_indices = @transform_1, window_bounds = array<i64: 128, 16>}, {transform_indices = @transform_2, window_bounds = array<i64: 16, 1>}, {transform_indices = @transform_3, window_bounds = array<i64: 1, 16>}, {transform_indices = @transform_4, window_bounds = array<i64: 16, 1>}, {transform_indices = @transform_5, window_bounds = array<i64: 16, 1>}]} {
    %c0_i32 = arith.constant 0 : i32
    %0 = arith.cmpi eq, %arg1, %c0_i32 : i32
    %1 = arith.extui %0 : i1 to i32
    %c0_i32_0 = arith.constant 0 : i32
    %2 = arith.cmpi ne, %1, %c0_i32_0 : i32
    scf.if %2 {
      %cst_17 = arith.constant -1.000000e+30 : f32
      %31 = vector.broadcast %cst_17 : f32 to vector<16x1xf32>
      %c0_18 = arith.constant 0 : index
      %c0_19 = arith.constant 0 : index
      %32 = vector.load %arg8[%c0_18, %c0_19] : memref<16x1xf32, #tpu.memory_space<vmem>>, vector<16x1xf32>
      tpu.vector_store %arg8[%c0_18, %c0_19], %31 {strides = array<i32>} : memref<16x1xf32, #tpu.memory_space<vmem>>, vector<16x1xf32>,
      %cst_20 = arith.constant 0.000000e+00 : f32
      %33 = vector.broadcast %cst_20 : f32 to vector<16x1xf32>
      %c0_21 = arith.constant 0 : index
      %c0_22 = arith.constant 0 : index
      %34 = vector.load %arg9[%c0_21, %c0_22] : memref<16x1xf32, #tpu.memory_space<vmem>>, vector<16x1xf32>
      tpu.vector_store %arg9[%c0_21, %c0_22], %33 {strides = array<i32>} : memref<16x1xf32, #tpu.memory_space<vmem>>, vector<16x1xf32>,
      %cst_23 = arith.constant 0.000000e+00 : f32
      %35 = vector.broadcast %cst_23 : f32 to vector<16x1xf32>
      %c0_24 = arith.constant 0 : index
      %c0_25 = arith.constant 0 : index
      %36 = vector.load %arg10[%c0_24, %c0_25] : memref<16x1xf32, #tpu.memory_space<vmem>>, vector<16x1xf32>
      tpu.vector_store %arg10[%c0_24, %c0_25], %35 {strides = array<i32>} : memref<16x1xf32, #tpu.memory_space<vmem>>, vector<16x1xf32>,
      %cst_26 = arith.constant 0.000000e+00 : f32
      %37 = vector.broadcast %cst_26 : f32 to vector<16x1xf32>
      %c0_27 = arith.constant 0 : index
      %c0_28 = arith.constant 0 : index
      %38 = vector.load %arg11[%c0_27, %c0_28] : memref<16x1xf32, #tpu.memory_space<vmem>>, vector<16x1xf32>
      tpu.vector_store %arg11[%c0_27, %c0_28], %37 {strides = array<i32>} : memref<16x1xf32, #tpu.memory_space<vmem>>, vector<16x1xf32>,
    } else {
    }
    %c0 = arith.constant 0 : index
    %c0_1 = arith.constant 0 : index
    %3 = vector.load %arg2[%c0, %c0_1] : memref<16x128xbf16, #tpu.memory_space<vmem>>, vector<16x128xbf16>
    %c0_2 = arith.constant 0 : index
    %c0_3 = arith.constant 0 : index
    %4 = vector.load %arg3[%c0_2, %c0_3] : memref<128x16xbf16, #tpu.memory_space<vmem>>, vector<128x16xbf16>
    %cst = arith.constant dense<0.000000e+00> : vector<16x16xf32>
    %5 = tpu.matmul %3, %4, %cst {dimension_numbers = #tpu.dot_dimension_numbers<[1], [0], [0], [1], [0, 0, 1, 1], [], []>} : vector<16x128xbf16>, vector<128x16xbf16>, vector<16x16xf32> -> vector<16x16xf32>
    %cst_4 = arith.constant 14.2857141 : f32
    %6 = vector.broadcast %cst_4 : f32 to vector<16x16xf32>
    %7 = arith.mulf %5, %6 : vector<16x16xf32>
    %c0_5 = arith.constant 0 : index
    %c0_6 = arith.constant 0 : index
    %8 = vector.load %arg4[%c0_5, %c0_6] : memref<16x1xi32, #tpu.memory_space<vmem>>, vector<16x1xi32>
    %c0_7 = arith.constant 0 : index
    %c0_8 = arith.constant 0 : index
    %9 = vector.load %arg5[%c0_7, %c0_8] : memref<1x16xi32, #tpu.memory_space<vmem>>, vector<1x16xi32>
    %10 = vector.broadcast %8 : vector<16x1xi32> to vector<16x16xi32>
    %11 = vector.broadcast %9 : vector<1x16xi32> to vector<16x16xi32>
    %12 = arith.cmpi eq, %10, %11 : vector<16x16xi32>
    %c16_i32 = arith.constant 16 : i32
    %13 = arith.muli %arg0, %c16_i32 : i32
    %c16_i32_9 = arith.constant 16 : i32
    %14 = arith.muli %arg1, %c16_i32_9 : i32
    %c16_i32_10 = arith.constant 16 : i32
    %15 = arith.addi %14, %c16_i32_10 : i32
    %16 = arith.cmpi slt, %13, %15 : i32
    %c16_i32_11 = arith.constant 16 : i32
    %17 = arith.addi %13, %c16_i32_11 : i32
    %18 = arith.cmpi slt, %14, %17 : i32
    %19 = arith.andi %16, %18 : i1
    %c16_i32_12 = arith.constant 16 : i32
    %20 = arith.addi %14, %c16_i32_12 : i32
    %c8_i32 = arith.constant 8 : i32
    %21 = arith.cmpi sgt, %20, %c8_i32 : i32
    %22 = arith.ori %19, %21 : i1
    %23 = arith.extui %22 : i1 to i32
    %c0_i32_13 = arith.constant 0 : i32
    %24 = arith.cmpi ne, %23, %c0_i32_13 : i32
    scf.if %24 {
      %31 = tpu.iota {dimensions = array<i32: 0>} : vector<16x1xi32>
      %32 = vector.broadcast %13 : i32 to vector<16x1xi32>
      %33 = arith.addi %32, %31 : vector<16x1xi32>
      %34 = tpu.iota {dimensions = array<i32: 1>} : vector<1x16xi32>
      %35 = vector.broadcast %14 : i32 to vector<1x16xi32>
      %36 = arith.addi %35, %34 : vector<1x16xi32>
      %37 = vector.broadcast %33 : vector<16x1xi32> to vector<16x16xi32>
      %38 = vector.broadcast %36 : vector<1x16xi32> to vector<16x16xi32>
      %39 = arith.cmpi ne, %37, %38 : vector<16x16xi32>
      %c8_i32_17 = arith.constant 8 : i32
      %40 = vector.broadcast %c8_i32_17 : i32 to vector<1x16xi32>
      %41 = arith.cmpi slt, %36, %40 : vector<1x16xi32>
      %42 = vector.broadcast %41 : vector<1x16xi1> to vector<16x16xi1>
      %43 = arith.andi %39, %42 : vector<16x16xi1>
      %c0_18 = arith.constant 0 : index
      %c0_19 = arith.constant 0 : index
      %44 = vector.load %arg8[%c0_18, %c0_19] : memref<16x1xf32, #tpu.memory_space<vmem>>, vector<16x1xf32>
      %cst_20 = arith.constant -1.000000e+30 : f32
      %45 = vector.broadcast %cst_20 : f32 to vector<16x16xf32>
      %46 = arith.select %43, %7, %45 : vector<16x16xi1>, vector<16x16xf32>
      %cst_21 = arith.constant dense<0xFF800000> : vector<16xf32>
      %47 = vector.multi_reduction <maximumf>, %46, %cst_21 [1] : vector<16x16xf32> to vector<16xf32>
      %48 = vector.shape_cast %47 : vector<16xf32> to vector<16x1xf32>
      %49 = arith.maximumf %44, %48 : vector<16x1xf32>
      %50 = vector.broadcast %49 : vector<16x1xf32> to vector<16x16xf32>
      %51 = arith.subf %46, %50 : vector<16x16xf32>
      %52 = math.exp %51 : vector<16x16xf32>
      %53 = arith.subf %44, %49 : vector<16x1xf32>
      %54 = math.exp %53 : vector<16x1xf32>
      %c0_22 = arith.constant 0 : index
      %c0_23 = arith.constant 0 : index
      %55 = vector.load %arg9[%c0_22, %c0_23] : memref<16x1xf32, #tpu.memory_space<vmem>>, vector<16x1xf32>
      %56 = arith.mulf %54, %55 : vector<16x1xf32>
      %cst_24 = arith.constant dense<0.000000e+00> : vector<16xf32>
      %57 = vector.multi_reduction <add>, %52, %cst_24 [1] : vector<16x16xf32> to vector<16xf32>
      %58 = vector.shape_cast %57 : vector<16xf32> to vector<16x1xf32>
      %59 = arith.addf %56, %58 : vector<16x1xf32>
      %c0_25 = arith.constant 0 : index
      %c0_26 = arith.constant 0 : index
      %60 = vector.load %arg9[%c0_25, %c0_26] : memref<16x1xf32, #tpu.memory_space<vmem>>, vector<16x1xf32>
      tpu.vector_store %arg9[%c0_25, %c0_26], %59 {strides = array<i32>} : memref<16x1xf32, #tpu.memory_space<vmem>>, vector<16x1xf32>,
      %c0_27 = arith.constant 0 : index
      %c0_28 = arith.constant 0 : index
      %61 = vector.load %arg8[%c0_27, %c0_28] : memref<16x1xf32, #tpu.memory_space<vmem>>, vector<16x1xf32>
      tpu.vector_store %arg8[%c0_27, %c0_28], %49 {strides = array<i32>} : memref<16x1xf32, #tpu.memory_space<vmem>>, vector<16x1xf32>,
      %62 = arith.andi %12, %43 : vector<16x16xi1>
      %63 = arith.extui %62 : vector<16x16xi1> to vector<16x16xi32>
      %64 = arith.sitofp %63 : vector<16x16xi32> to vector<16x16xf32>
      %c0_29 = arith.constant 0 : index
      %c0_30 = arith.constant 0 : index
      %65 = vector.load %arg10[%c0_29, %c0_30] : memref<16x1xf32, #tpu.memory_space<vmem>>, vector<16x1xf32>
      %66 = arith.mulf %64, %7 : vector<16x16xf32>
      %cst_31 = arith.constant dense<0.000000e+00> : vector<16xf32>
      %67 = vector.multi_reduction <add>, %66, %cst_31 [1] : vector<16x16xf32> to vector<16xf32>
      %68 = vector.shape_cast %67 : vector<16xf32> to vector<16x1xf32>
      %69 = arith.addf %65, %68 : vector<16x1xf32>
      %c0_32 = arith.constant 0 : index
      %c0_33 = arith.constant 0 : index
      %70 = vector.load %arg10[%c0_32, %c0_33] : memref<16x1xf32, #tpu.memory_space<vmem>>, vector<16x1xf32>
      tpu.vector_store %arg10[%c0_32, %c0_33], %69 {strides = array<i32>} : memref<16x1xf32, #tpu.memory_space<vmem>>, vector<16x1xf32>,
      %c0_34 = arith.constant 0 : index
      %c0_35 = arith.constant 0 : index
      %71 = vector.load %arg11[%c0_34, %c0_35] : memref<16x1xf32, #tpu.memory_space<vmem>>, vector<16x1xf32>
      %cst_36 = arith.constant dense<0.000000e+00> : vector<16xf32>
      %72 = vector.multi_reduction <add>, %64, %cst_36 [1] : vector<16x16xf32> to vector<16xf32>
      %73 = vector.shape_cast %72 : vector<16xf32> to vector<16x1xf32>
      %74 = arith.addf %71, %73 : vector<16x1xf32>
      %c0_37 = arith.constant 0 : index
      %c0_38 = arith.constant 0 : index
      %75 = vector.load %arg11[%c0_37, %c0_38] : memref<16x1xf32, #tpu.memory_space<vmem>>, vector<16x1xf32>
      tpu.vector_store %arg11[%c0_37, %c0_38], %74 {strides = array<i32>} : memref<16x1xf32, #tpu.memory_space<vmem>>, vector<16x1xf32>,
    } else {
    }
    %true = arith.constant true
    %25 = arith.xori %22, %true : i1
    %26 = arith.extui %25 : i1 to i32
    %c0_i32_14 = arith.constant 0 : i32
    %27 = arith.cmpi ne, %26, %c0_i32_14 : i32
    scf.if %27 {
      %c0_17 = arith.constant 0 : index
      %c0_18 = arith.constant 0 : index
      %31 = vector.load %arg8[%c0_17, %c0_18] : memref<16x1xf32, #tpu.memory_space<vmem>>, vector<16x1xf32>
      %cst_19 = arith.constant dense<0xFF800000> : vector<16xf32>
      %32 = vector.multi_reduction <maximumf>, %7, %cst_19 [1] : vector<16x16xf32> to vector<16xf32>
      %33 = vector.shape_cast %32 : vector<16xf32> to vector<16x1xf32>
      %34 = arith.maximumf %31, %33 : vector<16x1xf32>
      %35 = vector.broadcast %34 : vector<16x1xf32> to vector<16x16xf32>
      %36 = arith.subf %7, %35 : vector<16x16xf32>
      %37 = math.exp %36 : vector<16x16xf32>
      %38 = arith.subf %31, %34 : vector<16x1xf32>
      %39 = math.exp %38 : vector<16x1xf32>
      %c0_20 = arith.constant 0 : index
      %c0_21 = arith.constant 0 : index
      %40 = vector.load %arg9[%c0_20, %c0_21] : memref<16x1xf32, #tpu.memory_space<vmem>>, vector<16x1xf32>
      %41 = arith.mulf %39, %40 : vector<16x1xf32>
      %cst_22 = arith.constant dense<0.000000e+00> : vector<16xf32>
      %42 = vector.multi_reduction <add>, %37, %cst_22 [1] : vector<16x16xf32> to vector<16xf32>
      %43 = vector.shape_cast %42 : vector<16xf32> to vector<16x1xf32>
      %44 = arith.addf %41, %43 : vector<16x1xf32>
      %c0_23 = arith.constant 0 : index
      %c0_24 = arith.constant 0 : index
      %45 = vector.load %arg9[%c0_23, %c0_24] : memref<16x1xf32, #tpu.memory_space<vmem>>, vector<16x1xf32>
      tpu.vector_store %arg9[%c0_23, %c0_24], %44 {strides = array<i32>} : memref<16x1xf32, #tpu.memory_space<vmem>>, vector<16x1xf32>,
      %c0_25 = arith.constant 0 : index
      %c0_26 = arith.constant 0 : index
      %46 = vector.load %arg8[%c0_25, %c0_26] : memref<16x1xf32, #tpu.memory_space<vmem>>, vector<16x1xf32>
      tpu.vector_store %arg8[%c0_25, %c0_26], %34 {strides = array<i32>} : memref<16x1xf32, #tpu.memory_space<vmem>>, vector<16x1xf32>,
      %47 = arith.extui %12 : vector<16x16xi1> to vector<16x16xi32>
      %48 = arith.sitofp %47 : vector<16x16xi32> to vector<16x16xf32>
      %c0_27 = arith.constant 0 : index
      %c0_28 = arith.constant 0 : index
      %49 = vector.load %arg10[%c0_27, %c0_28] : memref<16x1xf32, #tpu.memory_space<vmem>>, vector<16x1xf32>
      %50 = arith.mulf %48, %7 : vector<16x16xf32>
      %cst_29 = arith.constant dense<0.000000e+00> : vector<16xf32>
      %51 = vector.multi_reduction <add>, %50, %cst_29 [1] : vector<16x16xf32> to vector<16xf32>
      %52 = vector.shape_cast %51 : vector<16xf32> to vector<16x1xf32>
      %53 = arith.addf %49, %52 : vector<16x1xf32>
      %c0_30 = arith.constant 0 : index
      %c0_31 = arith.constant 0 : index
      %54 = vector.load %arg10[%c0_30, %c0_31] : memref<16x1xf32, #tpu.memory_space<vmem>>, vector<16x1xf32>
      tpu.vector_store %arg10[%c0_30, %c0_31], %53 {strides = array<i32>} : memref<16x1xf32, #tpu.memory_space<vmem>>, vector<16x1xf32>,
      %c0_32 = arith.constant 0 : index
      %c0_33 = arith.constant 0 : index
      %55 = vector.load %arg11[%c0_32, %c0_33] : memref<16x1xf32, #tpu.memory_space<vmem>>, vector<16x1xf32>
      %cst_34 = arith.constant dense<0.000000e+00> : vector<16xf32>
      %56 = vector.multi_reduction <add>, %48, %cst_34 [1] : vector<16x16xf32> to vector<16xf32>
      %57 = vector.shape_cast %56 : vector<16xf32> to vector<16x1xf32>
      %58 = arith.addf %55, %57 : vector<16x1xf32>
      %c0_35 = arith.constant 0 : index
      %c0_36 = arith.constant 0 : index
      %59 = vector.load %arg11[%c0_35, %c0_36] : memref<16x1xf32, #tpu.memory_space<vmem>>, vector<16x1xf32>
      tpu.vector_store %arg11[%c0_35, %c0_36], %58 {strides = array<i32>} : memref<16x1xf32, #tpu.memory_space<vmem>>, vector<16x1xf32>,
    } else {
    }
    %c0_i32_15 = arith.constant 0 : i32
    %28 = arith.cmpi eq, %arg1, %c0_i32_15 : i32
    %29 = arith.extui %28 : i1 to i32
    %c0_i32_16 = arith.constant 0 : i32
    %30 = arith.cmpi ne, %29, %c0_i32_16 : i32
    scf.if %30 {
      %c0_17 = arith.constant 0 : index
      %c0_18 = arith.constant 0 : index
      %31 = vector.load %arg11[%c0_17, %c0_18] : memref<16x1xf32, #tpu.memory_space<vmem>>, vector<16x1xf32>
      %cst_19 = arith.constant 0.000000e+00 : f32
      %32 = vector.broadcast %cst_19 : f32 to vector<16x1xf32>
      %33 = arith.cmpf oeq, %31, %32 : vector<16x1xf32>
      %cst_20 = arith.constant 1.000000e+00 : f32
      %cst_21 = arith.constant 0.000000e+00 : f32
      %34 = vector.broadcast %cst_20 : f32 to vector<16x1xf32>
      %35 = vector.broadcast %cst_21 : f32 to vector<16x1xf32>
      %36 = arith.select %33, %34, %35 : vector<16x1xi1>, vector<16x1xf32>
      %c0_22 = arith.constant 0 : index
      %c0_23 = arith.constant 0 : index
      %37 = vector.load %arg8[%c0_22, %c0_23] : memref<16x1xf32, #tpu.memory_space<vmem>>, vector<16x1xf32>
      %c0_24 = arith.constant 0 : index
      %c0_25 = arith.constant 0 : index
      %38 = vector.load %arg9[%c0_24, %c0_25] : memref<16x1xf32, #tpu.memory_space<vmem>>, vector<16x1xf32>
      %39 = math.log %38 : vector<16x1xf32>
      %40 = arith.addf %37, %39 : vector<16x1xf32>
      %c0_26 = arith.constant 0 : index
      %c0_27 = arith.constant 0 : index
      %41 = vector.load %arg10[%c0_26, %c0_27] : memref<16x1xf32, #tpu.memory_space<vmem>>, vector<16x1xf32>
      %42 = arith.mulf %31, %40 : vector<16x1xf32>
      %43 = arith.subf %41, %42 : vector<16x1xf32>
      %44 = arith.addf %31, %36 : vector<16x1xf32>
      %45 = arith.divf %43, %44 : vector<16x1xf32>
      %cst_28 = arith.constant 0.000000e+00 : f32
      %46 = vector.broadcast %cst_28 : f32 to vector<16x1xf32>
      %47 = arith.subf %46, %45 : vector<16x1xf32>
      %cst_29 = arith.constant 1.000000e+00 : f32
      %48 = vector.broadcast %cst_29 : f32 to vector<16x1xf32>
      %49 = arith.subf %48, %36 : vector<16x1xf32>
      %50 = arith.mulf %47, %49 : vector<16x1xf32>
      %51 = tpu.iota {dimensions = array<i32: 0>} : vector<16x1xi32>
      %52 = vector.broadcast %13 : i32 to vector<16x1xi32>
      %53 = arith.addi %52, %51 : vector<16x1xi32>
      %c8_i32_30 = arith.constant 8 : i32
      %54 = vector.broadcast %c8_i32_30 : i32 to vector<16x1xi32>
      %55 = arith.cmpi slt, %53, %54 : vector<16x1xi32>
      %cst_31 = arith.constant 0.000000e+00 : f32
      %56 = vector.broadcast %cst_31 : f32 to vector<16x1xf32>
      %57 = arith.select %55, %50, %56 : vector<16x1xi1>, vector<16x1xf32>
      %cst_32 = arith.constant 0.000000e+00 : f32
      %58 = vector.broadcast %cst_32 : f32 to vector<16x1xf32>
      %59 = arith.select %55, %36, %58 : vector<16x1xi1>, vector<16x1xf32>
      %c0_33 = arith.constant 0 : index
      %c0_34 = arith.constant 0 : index
      %60 = vector.load %arg6[%c0_33, %c0_34] : memref<16x1xf32, #tpu.memory_space<vmem>>, vector<16x1xf32>
      tpu.vector_store %arg6[%c0_33, %c0_34], %57 {strides = array<i32>} : memref<16x1xf32, #tpu.memory_space<vmem>>, vector<16x1xf32>,
      %c0_35 = arith.constant 0 : index
      %c0_36 = arith.constant 0 : index
      %61 = vector.load %arg7[%c0_35, %c0_36] : memref<16x1xf32, #tpu.memory_space<vmem>>, vector<16x1xf32>
      tpu.vector_store %arg7[%c0_35, %c0_36], %59 {strides = array<i32>} : memref<16x1xf32, #tpu.memory_space<vmem>>, vector<16x1xf32>,
    } else {
    }
    return
  }
  func.func @transform_0(%arg0: i32, %arg1: i32) -> (i32, i32) {
    %c0_i32 = arith.constant 0 : i32
    %c0_i32_0 = arith.constant 0 : i32
    return %arg0, %c0_i32 : i32, i32
  }
  func.func @transform_1(%arg0: i32, %arg1: i32) -> (i32, i32) {
    %c0_i32 = arith.constant 0 : i32
    %c0_i32_0 = arith.constant 0 : i32
    return %c0_i32, %arg1 : i32, i32
  }
  func.func @transform_2(%arg0: i32, %arg1: i32) -> (i32, i32) {
    %c0_i32 = arith.constant 0 : i32
    %c0_i32_0 = arith.constant 0 : i32
    return %arg0, %c0_i32 : i32, i32
  }
  func.func @transform_3(%arg0: i32, %arg1: i32) -> (i32, i32) {
    %c0_i32 = arith.constant 0 : i32
    %c0_i32_0 = arith.constant 0 : i32
    return %c0_i32, %arg1 : i32, i32
  }
  func.func @transform_4(%arg0: i32, %arg1: i32) -> (i32, i32) {
    %c0_i32 = arith.constant 0 : i32
    %c0_i32_0 = arith.constant 0 : i32
    return %arg0, %c0_i32 : i32, i32
  }
  func.func @transform_5(%arg0: i32, %arg1: i32) -> (i32, i32) {
    %c0_i32 = arith.constant 0 : i32
    %c0_i32_0 = arith.constant 0 : i32
    return %arg0, %c0_i32 : i32, i32
  }
}

</mosaic_0001>

<llo_original>
// kernel: tpu_custom_call.1
$region0: #{tpu_custom_call.1}
  #allocation0 [shape = 'u32[]', space=smem, size = 0x4, offset = 0x4, fixed_abs, tag = 'smem constant byte address 0x4 - core index']
  #allocation1 [shape = 'u32[144,128]{1,0:T(1,128)}', space=vmem, size = 0x12000, scoped, tag = 'internal scratch']
  #allocation2 [shape = 'f32[16,1]{1,0:T(8,128)}', space=vmem, size = 0x2000, scoped, tag = 'scratch operand']
  #allocation3 [shape = 'f32[16,1]{1,0:T(8,128)}', space=vmem, size = 0x2000, scoped, tag = 'scratch operand']
  #allocation4 [shape = 'f32[16,1]{1,0:T(8,128)}', space=vmem, size = 0x2000, scoped, tag = 'scratch operand']
  #allocation5 [shape = 'f32[16,1]{1,0:T(8,128)}', space=vmem, size = 0x2000, scoped, tag = 'scratch operand']
  %s0 = inlined_call_operand.vmem [shape: bf16[16,128], index: 0, kind: input, shape index: {}]
  %s1 = inlined_call_operand.vmem [shape: bf16[128,16], index: 1, kind: input, shape index: {}]
  %s2 = inlined_call_operand.vmem [shape: s32[16,1], index: 2, kind: input, shape index: {}]
  %s3 = inlined_call_operand.vmem [shape: s32[1,16], index: 3, kind: input, shape index: {}]
  %s4 = inlined_call_operand.vmem [shape: f32[16,1], index: 4, kind: output, shape index: {0}]
  %s5 = inlined_call_operand.vmem [shape: f32[16,1], index: 5, kind: output, shape index: {1}]
  %6 = xla_tuple %s4, %s5
  %s7 = sld [smem:[#allocation0]]
  $region50: #{tpu_custom_call.1} parent=0
    _
  %s9 = ssub.s32 1, %s7
  %s10 = scalar_select 0, %s9, %s7
  // Predicated region
  $region2: #{tpu_custom_call.1} parent=0 // pred_check
    _
  $region3: #{tpu_custom_call.1} parent=0 // pred_check_branch
    %12 = sbr.rel (0) target = $region5
  $region4: #{tpu_custom_call.1} parent=0 // pred_region
    _
  $region5: #{tpu_custom_call.1} parent=0 // pred_fallthru
    _
  // Predicated region
  $region6: #{tpu_custom_call.1} parent=0 // pred_check
    _
  $region7: #{tpu_custom_call.1} parent=0 // pred_check_branch
    %14 = sbr.rel (0) target = $region9
  $region8: #{tpu_custom_call.1} parent=0 // pred_region
    _
  $region9: #{tpu_custom_call.1} parent=0 // pred_fallthru
    _
  // Predicated region
  $region10: #{tpu_custom_call.1} parent=0 // pred_check
    _
  $region11: #{tpu_custom_call.1} parent=0 // pred_check_branch
    %16 = sbr.rel (0) target = $region13
  $region12: #{tpu_custom_call.1} parent=0 // pred_region
    _
  $region13: #{tpu_custom_call.1} parent=0 // pred_fallthru
    _
  // Predicated region
  $region14: #{tpu_custom_call.1} parent=0 // pred_check
    _
  $region15: #{tpu_custom_call.1} parent=0 // pred_check_branch
    %18 = sbr.rel (0) target = $region17
  $region16: #{tpu_custom_call.1} parent=0 // pred_region
    _
  $region17: #{tpu_custom_call.1} parent=0 // pred_fallthru
    _
  %p20 = scmp.eq.s32.totalorder 0, 0
  // Predicated region
  $region18: #{tpu_custom_call.1} parent=0 // pred_check
    %p21 = pneg %p20
  $region19: #{tpu_custom_call.1} parent=0 // pred_check_branch
    %23 = sbr.rel (%p21) target = $region21
  $region20: #{tpu_custom_call.1} parent=0 // pred_region
    %vm24 = vcmask 7168
    %25 = vst.msk [vmem:[#allocation2] sm:$0xff] %vm24, -1e+30
    %26 = vst.msk [vmem:[#allocation2 + $0x8] sm:$0xff] %vm24, -1e+30
    %27 = vst.msk [vmem:[#allocation3] sm:$0xff] %vm24, 0.0
    %28 = vst.msk [vmem:[#allocation3 + $0x8] sm:$0xff] %vm24, 0.0
    %29 = vst.msk [vmem:[#allocation4] sm:$0xff] %vm24, 0.0
    %30 = vst.msk [vmem:[#allocation4 + $0x8] sm:$0xff] %vm24, 0.0
    %31 = vst.msk [vmem:[#allocation5] sm:$0xff] %vm24, 0.0
    %32 = vst.msk [vmem:[#allocation5 + $0x8] sm:$0xff] %vm24, 0.0
  $region21: #{tpu_custom_call.1} parent=0 // pred_fallthru
    _
  %v33 = vld [vmem:[%s0] sm:$0xf]
  %v34 = vld [vmem:[%s0 + $0x4] sm:$0xf]
  %v35 = vld [vmem:[%s1] sm:$0xf]
  %v36 = vld [vmem:[%s1 + $0x4] sm:$0xf]
  %v37 = vld [vmem:[%s1 + $0x8] sm:$0xf]
  %v38 = vld [vmem:[%s1 + $0xc] sm:$0xf]
  %v39 = vld [vmem:[%s1 + $0x10] sm:$0xf]
  %v40 = vld [vmem:[%s1 + $0x14] sm:$0xf]
  %v41 = vld [vmem:[%s1 + $0x18] sm:$0xf]
  %v42 = vld [vmem:[%s1 + $0x1c] sm:$0xf]
  %v43 = vld [vmem:[%s1 + $0x20] sm:$0xf]
  %v44 = vld [vmem:[%s1 + $0x24] sm:$0xf]
  %v45 = vld [vmem:[%s1 + $0x28] sm:$0xf]
  %v46 = vld [vmem:[%s1 + $0x2c] sm:$0xf]
  %v47 = vld [vmem:[%s1 + $0x30] sm:$0xf]
  %v48 = vld [vmem:[%s1 + $0x34] sm:$0xf]
  %v49 = vld [vmem:[%s1 + $0x38] sm:$0xf]
  %v50 = vld [vmem:[%s1 + $0x3c] sm:$0xf]
  %v53 = vunpack.c.l.b16 %v33
  %v54 = vunpack.c.l.b16 %v34
  %v55 = vpack.c.b16 %v54, %v53
  %v73 = vunpack.c.l.b16 %v35
  %v74 = vunpack.c.l.b16 %v36
  %v75 = vunpack.c.l.b16 %v37
  %v76 = vunpack.c.l.b16 %v38
  %v77 = vunpack.c.l.b16 %v39
  %v78 = vunpack.c.l.b16 %v40
  %v79 = vunpack.c.l.b16 %v41
  %v80 = vunpack.c.l.b16 %v42
  %v81 = vunpack.c.l.b16 %v43
  %v82 = vunpack.c.l.b16 %v44
  %v83 = vunpack.c.l.b16 %v45
  %v84 = vunpack.c.l.b16 %v46
  %v85 = vunpack.c.l.b16 %v47
  %v86 = vunpack.c.l.b16 %v48
  %v87 = vunpack.c.l.b16 %v49
  %v88 = vunpack.c.l.b16 %v50
  %v89 = vpack.c.b16 %v74, %v73
  %v90 = vpack.c.b16 %v76, %v75
  %v91 = vpack.c.b16 %v78, %v77
  %v92 = vpack.c.b16 %v80, %v79
  %v93 = vpack.c.b16 %v82, %v81
  %v94 = vpack.c.b16 %v84, %v83
  %v95 = vpack.c.b16 %v86, %v85
  %v96 = vpack.c.b16 %v88, %v87
  %105 = vmatprep.subr.bf16.mxu0 0
  %106 = vmatpush1.bf16.msra.mxu0 %v96
  %107 = vmatprep.subr.bf16.mxu0 0
  %108 = vmatpush1.bf16.msra.mxu0 %v95
  %109 = vmatprep.subr.bf16.mxu0 0
  %110 = vmatpush1.bf16.msra.mxu0 %v94
  %111 = vmatprep.subr.bf16.mxu0 0
  %112 = vmatpush1.bf16.msra.mxu0 %v93
  %113 = vmatprep.subr.bf16.mxu0 0
  %114 = vmatpush1.bf16.msra.mxu0 %v92
  %115 = vmatprep.subr.bf16.mxu0 0
  %116 = vmatpush1.bf16.msra.mxu0 %v91
  %117 = vmatprep.subr.bf16.mxu0 0
  %118 = vmatpush1.bf16.msra.mxu0 %v90
  %119 = vmatprep.subr.bf16.mxu0 0
  %120 = vmatpush1.bf16.msra.mxu0 %v89
  %121 = vmatprep.subr.bf16.mxu0 0
  %122 = vmatpush2.bf16.msra.mxu0 0
  %123 = vmatprep.subr.bf16.mxu0 0
  %124 = vmatpush2.bf16.msra.mxu0 0
  %125 = vmatprep.subr.bf16.mxu0 0
  %126 = vmatpush2.bf16.msra.mxu0 0
  %127 = vmatprep.subr.bf16.mxu0 0
  %128 = vmatpush2.bf16.msra.mxu0 0
  %129 = vmatprep.subr.bf16.mxu0 0
  %130 = vmatpush2.bf16.msra.mxu0 0
  %131 = vmatprep.subr.bf16.mxu0 0
  %132 = vmatpush2.bf16.msra.mxu0 0
  %133 = vmatprep.subr.bf16.mxu0 0
  %134 = vmatpush2.bf16.msra.mxu0 0
  %135 = vmatprep.subr.bf16.mxu0 0
  %136 = vmatpush2.bf16.msra.mxu0 0
  %137 = vmatprep.mubr.bf16.mxu0 0
  %138 = vmatmul.mubr.bf16.gmra.mxu0 %v55
  %v139 = vpop.f32.mrf.mxu0
  %v140 = vadd.f32 0.0, %v139
  %v141 = vpop.f32.mrf.mxu0
  %v142 = vpop.f32.mrf.mxu0
  %v143 = vadd.f32 0.0, %v142
  %v144 = vpop.f32.mrf.mxu0
  %145 = vdwg.mxu0
  %v146 = vmul.f32 %v140, 14.285714
  %v147 = vmul.f32 %v143, 14.285714
  %v148 = vld [vmem:[%s2] sm:$0xff]
  %v149 = vld [vmem:[%s2 + $0x8] sm:$0xff]
  %v150 = vld [vmem:[%s3] sm:$0x1]
  %151 = vset.pattern.permute.xlu0 0
  %152 = vperm.xlu0 %151, %v148
  %v153 = vpop.permute.xlu0 %152
  %154 = vset.pattern.permute.xlu0 0
  %155 = vperm.xlu0 %154, %v149
  %v156 = vpop.permute.xlu0 %155
  %v157 = vlaneseq
  %v158 = vshrl.u32 %v157, 7
  %v159 = vsub.s32 0, %v158
  %v160 = vrot.slane %v150, %v159
  %vm161 = vcmp.eq.s32.totalorder %v153, %v160
  %vm162 = vcmp.eq.s32.totalorder %v156, %v160
  %s163 = smul.u32 0, 16
  %s164 = smul.u32 0, 16
  %s165 = sadd.s32 %s164, 16
  %p166 = scmp.lt.s32.totalorder %s163, %s165
  %s167 = sadd.s32 %s163, 16
  %p168 = scmp.lt.s32.totalorder %s164, %s167
  %p169 = pnand %p166, %p168
  %p170 = pneg %p169
  %p171 = scmp.gt.s32.totalorder %s165, 8
  %p172 = por %p170, %p171
  // Predicated region
  $region22: #{tpu_custom_call.1} parent=0 // pred_check
    %p173 = pneg %p172
  $region23: #{tpu_custom_call.1} parent=0 // pred_check_branch
    %175 = sbr.rel (%p173) target = $region25
  $region24: #{tpu_custom_call.1} parent=0 // pred_region
    %v176 = vlaneseq
    %v177 = vshrl.u32 %v176, 7
    %v178 = vadd.s32 %v177, 8
    %v179 = vstv %s163
    %v180 = vadd.s32 %v179, %v177
    %v181 = vadd.s32 %v179, %v178
    %v182 = vlaneseq
    %v183 = vand.u32 %v182, 127
    %v184 = vstv %s164
    %v185 = vadd.s32 %v184, %v183
    %vm186 = vcmp.ne.s32.totalorder %v180, %v185
    %vm187 = vcmp.ne.s32.totalorder %v181, %v185
    %vm188 = vcmp.lt.s32.totalorder %v185, 8
    %v189 = vsel %vm188, 1, 0
    %vm190 = vcmp.eq.s32.totalorder %v189, 1
    %vm191 = vmand %vm186, %vm190
    %vm192 = vmand %vm187, %vm190
    %v193 = vld [vmem:[#allocation2] sm:$0xff]
    %v194 = vld [vmem:[#allocation2 + $0x8] sm:$0xff]
    %v195 = vsel %vm191, %v146, -1e+30
    %v196 = vsel %vm192, %v147, -1e+30
    %vm197 = vcmask 130048
    %v198 = vsel %vm197, %v195, -inf
    %199 = vmax.xlane.f32.xlu0 %v198
    %v200 = vpop.xlane.xlu0 %199
    %v201 = vsel %vm197, %v196, -inf
    %202 = vmax.xlane.f32.xlu0 %v201
    %v203 = vpop.xlane.xlu0 %202
    %v204 = vmax.f32 %v193, %v200
    %v205 = vmax.f32 %v194, %v203
    %207 = vset.pattern.permute.xlu0 0
    %208 = vperm.xlu0 %207, %v204
    %v209 = vpop.permute.xlu0 %208
    %212 = vset.pattern.permute.xlu0 0
    %213 = vperm.xlu0 %212, %v205
    %v214 = vpop.permute.xlu0 %213
    %v216 = vsub.f32 %v195, %v209
    %v217 = vsub.f32 %v196, %v214
    %v218 = vmul.f32 %v216, 1.442695
    %v219 = vpow.pop %v218
    %v220 = vmul.f32 %v217, 1.442695
    %v221 = vpow.pop %v220
    %v222 = vsub.f32 %v193, %v204
    %v223 = vsub.f32 %v194, %v205
    %v224 = vmul.f32 %v222, 1.442695
    %v225 = vpow.pop %v224
    %v226 = vmul.f32 %v223, 1.442695
    %v227 = vpow.pop %v226
    %v228 = vld [vmem:[#allocation3] sm:$0xff]
    %v229 = vld [vmem:[#allocation3 + $0x8] sm:$0xff]
    %v230 = vmul.f32 %v225, %v228
    %v231 = vmul.f32 %v227, %v229
    %v232 = vsel %vm197, %v219, 0.0
    %233 = vadd.xlane.f32.xlu0 %v232
    %v234 = vpop.xlane.xlu0 %233
    %v235 = vsel %vm197, %v221, 0.0
    %236 = vadd.xlane.f32.xlu0 %v235
    %v237 = vpop.xlane.xlu0 %236
    %v238 = vadd.f32 %v230, %v234
    %v239 = vadd.f32 %v231, %v237
    %vm240 = vcmask 7168
    %241 = vst.msk [vmem:[#allocation3] sm:$0xff] %vm240, %v238
    %242 = vst.msk [vmem:[#allocation3 + $0x8] sm:$0xff] %vm240, %v239
    %243 = vst.msk [vmem:[#allocation2] sm:$0xff] %vm240, %v204
    %244 = vst.msk [vmem:[#allocation2 + $0x8] sm:$0xff] %vm240, %v205
    %vm245 = vmand %vm161, %vm191
    %vm246 = vmand %vm162, %vm192
    %v247 = vsel %vm245, 1, 0
    %v248 = vsel %vm246, 1, 0
    %v249 = vcvt.s32.f32 %v247
    %v250 = vcvt.s32.f32 %v248
    %v251 = vld [vmem:[#allocation4] sm:$0xff]
    %v252 = vld [vmem:[#allocation4 + $0x8] sm:$0xff]
    %v253 = vmul.f32 %v249, %v146
    %v254 = vmul.f32 %v250, %v147
    %v255 = vsel %vm197, %v253, 0.0
    %256 = vadd.xlane.f32.xlu0 %v255
    %v257 = vpop.xlane.xlu0 %256
    %v258 = vsel %vm197, %v254, 0.0
    %259 = vadd.xlane.f32.xlu0 %v258
    %v260 = vpop.xlane.xlu0 %259
    %v261 = vadd.f32 %v251, %v257
    %v262 = vadd.f32 %v252, %v260
    %263 = vst.msk [vmem:[#allocation4] sm:$0xff] %vm240, %v261
    %264 = vst.msk [vmem:[#allocation4 + $0x8] sm:$0xff] %vm240, %v262
    %v265 = vld [vmem:[#allocation5] sm:$0xff]
    %v266 = vld [vmem:[#allocation5 + $0x8] sm:$0xff]
    %v267 = vsel %vm197, %v249, 0.0
    %268 = vadd.xlane.f32.xlu0 %v267
    %v269 = vpop.xlane.xlu0 %268
    %v270 = vsel %vm197, %v250, 0.0
    %271 = vadd.xlane.f32.xlu0 %v270
    %v272 = vpop.xlane.xlu0 %271
    %v273 = vadd.f32 %v265, %v269
    %v274 = vadd.f32 %v266, %v272
    %275 = vst.msk [vmem:[#allocation5] sm:$0xff] %vm240, %v273
    %276 = vst.msk [vmem:[#allocation5 + $0x8] sm:$0xff] %vm240, %v274
  $region25: #{tpu_custom_call.1} parent=0 // pred_fallthru
    _
  %p277 = pneg %p172
  // Predicated region
  $region26: #{tpu_custom_call.1} parent=0 // pred_check
    _
  $region27: #{tpu_custom_call.1} parent=0 // pred_check_branch
    %279 = sbr.rel (%p172) target = $region29
  $region28: #{tpu_custom_call.1} parent=0 // pred_region
    %v280 = vld [vmem:[#allocation2] sm:$0xff]
    %v281 = vld [vmem:[#allocation2 + $0x8] sm:$0xff]
    %vm282 = vcmask 130048
    %v283 = vsel %vm282, %v146, -inf
    %284 = vmax.xlane.f32.xlu0 %v283
    %v285 = vpop.xlane.xlu0 %284
    %v286 = vsel %vm282, %v147, -inf
    %287 = vmax.xlane.f32.xlu0 %v286
    %v288 = vpop.xlane.xlu0 %287
    %v289 = vmax.f32 %v280, %v285
    %v290 = vmax.f32 %v281, %v288
    %292 = vset.pattern.permute.xlu0 0
    %293 = vperm.xlu0 %292, %v289
    %v294 = vpop.permute.xlu0 %293
    %297 = vset.pattern.permute.xlu0 0
    %298 = vperm.xlu0 %297, %v290
    %v299 = vpop.permute.xlu0 %298
    %v301 = vsub.f32 %v146, %v294
    %v302 = vsub.f32 %v147, %v299
    %v303 = vmul.f32 %v301, 1.442695
    %v304 = vpow.pop %v303
    %v305 = vmul.f32 %v302, 1.442695
    %v306 = vpow.pop %v305
    %v307 = vsub.f32 %v280, %v289
    %v308 = vsub.f32 %v281, %v290
    %v309 = vmul.f32 %v307, 1.442695
    %v310 = vpow.pop %v309
    %v311 = vmul.f32 %v308, 1.442695
    %v312 = vpow.pop %v311
    %v313 = vld [vmem:[#allocation3] sm:$0xff]
    %v314 = vld [vmem:[#allocation3 + $0x8] sm:$0xff]
    %v315 = vmul.f32 %v310, %v313
    %v316 = vmul.f32 %v312, %v314
    %v317 = vsel %vm282, %v304, 0.0
    %318 = vadd.xlane.f32.xlu0 %v317
    %v319 = vpop.xlane.xlu0 %318
    %v320 = vsel %vm282, %v306, 0.0
    %321 = vadd.xlane.f32.xlu0 %v320
    %v322 = vpop.xlane.xlu0 %321
    %v323 = vadd.f32 %v315, %v319
    %v324 = vadd.f32 %v316, %v322
    %vm325 = vcmask 7168
    %326 = vst.msk [vmem:[#allocation3] sm:$0xff] %vm325, %v323
    %327 = vst.msk [vmem:[#allocation3 + $0x8] sm:$0xff] %vm325, %v324
    %328 = vst.msk [vmem:[#allocation2] sm:$0xff] %vm325, %v289
    %329 = vst.msk [vmem:[#allocation2 + $0x8] sm:$0xff] %vm325, %v290
    %v330 = vsel %vm161, 1, 0
    %v331 = vsel %vm162, 1, 0
    %v332 = vcvt.s32.f32 %v330
    %v333 = vcvt.s32.f32 %v331
    %v334 = vld [vmem:[#allocation4] sm:$0xff]
    %v335 = vld [vmem:[#allocation4 + $0x8] sm:$0xff]
    %v336 = vmul.f32 %v332, %v146
    %v337 = vmul.f32 %v333, %v147
    %v338 = vsel %vm282, %v336, 0.0
    %339 = vadd.xlane.f32.xlu0 %v338
    %v340 = vpop.xlane.xlu0 %339
    %v341 = vsel %vm282, %v337, 0.0
    %342 = vadd.xlane.f32.xlu0 %v341
    %v343 = vpop.xlane.xlu0 %342
    %v344 = vadd.f32 %v334, %v340
    %v345 = vadd.f32 %v335, %v343
    %346 = vst.msk [vmem:[#allocation4] sm:$0xff] %vm325, %v344
    %347 = vst.msk [vmem:[#allocation4 + $0x8] sm:$0xff] %vm325, %v345
    %v348 = vld [vmem:[#allocation5] sm:$0xff]
    %v349 = vld [vmem:[#allocation5 + $0x8] sm:$0xff]
    %v350 = vsel %vm282, %v332, 0.0
    %351 = vadd.xlane.f32.xlu0 %v350
    %v352 = vpop.xlane.xlu0 %351
    %v353 = vsel %vm282, %v333, 0.0
    %354 = vadd.xlane.f32.xlu0 %v353
    %v355 = vpop.xlane.xlu0 %354
    %v356 = vadd.f32 %v348, %v352
    %v357 = vadd.f32 %v349, %v355
    %358 = vst.msk [vmem:[#allocation5] sm:$0xff] %vm325, %v356
    %359 = vst.msk [vmem:[#allocation5 + $0x8] sm:$0xff] %vm325, %v357
  $region29: #{tpu_custom_call.1} parent=0 // pred_fallthru
    _
  // Predicated region
  $region30: #{tpu_custom_call.1} parent=0 // pred_check
    %p360 = pneg %p20
  $region31: #{tpu_custom_call.1} parent=0 // pred_check_branch
    %362 = sbr.rel (%p360) target = $region33
  $region32: #{tpu_custom_call.1} parent=0 // pred_region
    %v363 = vld [vmem:[#allocation5] sm:$0xff]
    %v364 = vld [vmem:[#allocation5 + $0x8] sm:$0xff]
    %vm365 = vcmp.eq.f32.partialorder %v363, 0.0
    %vm366 = vcmp.eq.f32.partialorder %v364, 0.0
    %v367 = vsel %vm365, 1.0, 0.0
    %v368 = vsel %vm366, 1.0, 0.0
    %v369 = vld [vmem:[#allocation2] sm:$0xff]
    %v370 = vld [vmem:[#allocation2 + $0x8] sm:$0xff]
    %v371 = vld [vmem:[#allocation3] sm:$0xff]
    %v372 = vld [vmem:[#allocation3 + $0x8] sm:$0xff]
    %v373 = vlog2.pop %v371
    %v374 = vmul.f32 %v373, 0.6931472
    %v375 = vlog2.pop %v372
    %v376 = vmul.f32 %v375, 0.6931472
    %v377 = vadd.f32 %v369, %v374
    %v378 = vadd.f32 %v370, %v376
    %v379 = vld [vmem:[#allocation4] sm:$0xff]
    %v380 = vld [vmem:[#allocation4 + $0x8] sm:$0xff]
    %v381 = vmul.f32 %v363, %v377
    %v382 = vmul.f32 %v364, %v378
    %v383 = vsub.f32 %v379, %v381
    %v384 = vsub.f32 %v380, %v382
    %v385 = vadd.f32 %v363, %v367
    %v386 = vadd.f32 %v364, %v368
    %v387 = vrcp.pop %v385
    %v388 = vmul.f32 %v383, %v387
    %v389 = vrcp.pop %v386
    %v390 = vmul.f32 %v384, %v389
    %v391 = vsub.f32 0.0, %v388
    %v392 = vsub.f32 0.0, %v390
    %v393 = vsub.f32 1.0, %v367
    %v394 = vsub.f32 1.0, %v368
    %v395 = vmul.f32 %v391, %v393
    %v396 = vmul.f32 %v392, %v394
    %v397 = vlaneseq
    %v398 = vshrl.u32 %v397, 7
    %v399 = vadd.s32 %v398, 8
    %v400 = vstv %s163
    %v401 = vadd.s32 %v400, %v398
    %v402 = vadd.s32 %v400, %v399
    %vm403 = vcmp.lt.s32.totalorder %v401, 8
    %vm404 = vcmp.lt.s32.totalorder %v402, 8
    %v405 = vsel %vm403, %v395, 0.0
    %v406 = vsel %vm404, %v396, 0.0
    %v407 = vsel %vm403, %v367, 0.0
    %v408 = vsel %vm404, %v368, 0.0
    %vm409 = vcmask 7168
    %410 = vst.msk [vmem:[%s4] sm:$0xff] %vm409, %v405
    %411 = vst.msk [vmem:[%s4 + $0x8] sm:$0xff] %vm409, %v406
    %412 = vst.msk [vmem:[%s5] sm:$0xff] %vm409, %v407
    %413 = vst.msk [vmem:[%s5 + $0x8] sm:$0xff] %vm409, %v408
  $region33: #{tpu_custom_call.1} parent=0 // pred_fallthru
    _
  // Predicated region
  $region34: #{tpu_custom_call.1} parent=0 // pred_check
    _
  $region35: #{tpu_custom_call.1} parent=0 // pred_check_branch
    %415 = sbr.rel (0) target = $region37
  $region36: #{tpu_custom_call.1} parent=0 // pred_region
    _
  $region37: #{tpu_custom_call.1} parent=0 // pred_fallthru
    _
  // Predicated region
  $region38: #{tpu_custom_call.1} parent=0 // pred_check
    _
  $region39: #{tpu_custom_call.1} parent=0 // pred_check_branch
    %417 = sbr.rel (0) target = $region41
  $region40: #{tpu_custom_call.1} parent=0 // pred_region
    _
  $region41: #{tpu_custom_call.1} parent=0 // pred_fallthru
    _
  // Predicated region
  $region42: #{tpu_custom_call.1} parent=0 // pred_check
    _
  $region43: #{tpu_custom_call.1} parent=0 // pred_check_branch
    %419 = sbr.rel (0) target = $region45
  $region44: #{tpu_custom_call.1} parent=0 // pred_region
    _
  $region45: #{tpu_custom_call.1} parent=0 // pred_fallthru
    _
  // Predicated region
  $region46: #{tpu_custom_call.1} parent=0 // pred_check
    _
  $region47: #{tpu_custom_call.1} parent=0 // pred_check_branch
    %421 = sbr.rel (0) target = $region49
  $region48: #{tpu_custom_call.1} parent=0 // pred_region
    _
  $region49: #{tpu_custom_call.1} parent=0 // pred_fallthru
    _

</llo_original>
